<compile_context>
chip_gen: v7x
topology: tpu7x:2x2x1
jax: 0.10.0
libtpu: 0.0.40
codegen_flags: <defaults>
</compile_context>

<pallas_src>
import functools
import math

import jax
import jax.numpy as jnp
from jax.experimental import pallas as pl
from jax.experimental.pallas import tpu as pltpu

LANE = 128


def _round_up(x, m):
    return (x + m - 1) // m * m


# ----------------------------------------------------------------------------
# Fused multi-layer SAGE kernel: one SAGEConv layer per grid step.
# ----------------------------------------------------------------------------
def _fused_sage_kernel(adj_ref, inv_ref, x_ref, w_ref, b_ref, o_ref, buf_ref, *,
                       num_layers, resident_weights):
    """
    adj_ref : [Np, Np]            bf16  binary adjacency (VMEM-resident, 1 buffer)
    inv_ref : [Np, 1]             f32   1/deg per row (VMEM-resident, 1 buffer)
    x_ref   : [Np, C]             bf16  padded input features (resident, 1 buffer)
    w_ref   : [L, 2C, C] or [1, 2C, C]  bf16  fused [W_l ; W_r] (resident or streamed)
    b_ref   : [L, 1, C]           f32   all biases (VMEM-resident)
    o_ref   : [Np, Cout_pad]      f32   final-layer output (lane-dense)
    buf_ref : [Np, 2C]            bf16  scratch: [:, :C] = agg, [:, C:] = activation
    """
    layer = pl.program_id(0)
    c = x_ref.shape[1]

    @pl.when(layer == 0)
    def _():
        buf_ref[:, c:] = x_ref[...]

    x_l = buf_ref[:, c:]                                                  # [Np, C] bf16

    # Mean aggregation: binary-adjacency MXU matmul, then per-row 1/deg scale
    # in f32 (exact normalization, no bf16 1/deg rounding).
    agg = jnp.dot(adj_ref[...], x_l, preferred_element_type=jnp.float32)  # [Np, C] f32
    agg = agg * inv_ref[...]

    # Write agg into the left half of the fused buffer -> [agg | x] with no
    # concatenate temporary; single K = 2*C matmul against [W_l ; W_r].
    buf_ref[:, :c] = agg.astype(buf_ref.dtype)

    w = w_ref[layer] if resident_weights else w_ref[0]                    # [2C, C] bf16
    b = b_ref[layer]                                                      # [1, C]  f32
    out = jnp.dot(buf_ref[...], w, preferred_element_type=jnp.float32) + b

    @pl.when(layer < num_layers - 1)
    def _():
        # ReLU (+ dropout = identity at inference) in f32; store next-layer
        # activation as bf16 into the right half of the carry buffer.
        buf_ref[:, c:] = jnp.maximum(out, 0.0).astype(buf_ref.dtype)

    @pl.when(layer == num_layers - 1)
    def _():
        o_ref[...] = out[:, : o_ref.shape[1]]


# ----------------------------------------------------------------------------
# Wrapper: preprocess (binary adj + inv_deg, pad, fuse/stack weights) + one
# pallas_call over the layer axis.
# ----------------------------------------------------------------------------
def sage_forward(x, adj, params):
    """Full SAGE forward.

    x      : [N, Cin] f32 node features
    adj    : [N, N]   f32, adj[i, j] = 1.0 if j is a neighbor of i
    params : list of (w_l [Cin, Cout], w_r [Cin, Cout], b [Cout]) per layer
    """
    n, c_in = x.shape
    num_layers = len(params)
    c_out_final = params[-1][0].shape[1]

    # Pad every channel dim to one common lane-dense width; pad nodes to 128.
    c_pad = _round_up(max([c_in] + [w.shape[1] for (w, _, _) in params]), LANE)
    c_pad_out = _round_up(c_out_final, LANE)          # final output at its own width
    n_pad = _round_up(n, LANE)

    # ---- one-time, layer-invariant preprocessing (plain JAX) ----
    deg = jnp.sum(adj, axis=-1, keepdims=True)
    inv_deg = (1.0 / jnp.maximum(deg, 1.0)).astype(jnp.float32)       # isolated -> 1 (agg is 0 anyway)
    inv_deg = jnp.pad(inv_deg, ((0, n_pad - n), (0, 0)))
    adj_bin = jnp.pad(adj, ((0, n_pad - n), (0, n_pad - n))).astype(jnp.bfloat16)  # 0/1, exact in bf16

    x_p = jnp.pad(x, ((0, n_pad - n), (0, c_pad - c_in))).astype(jnp.bfloat16)

    # Stack per-layer fused weights [W_l ; W_r] -> [L, 2*c_pad, c_pad] and biases.
    w_stack, b_stack = [], []
    for (w_l, w_r, b) in params:
        ci, co = w_l.shape
        w_l_p = jnp.pad(w_l, ((0, c_pad - ci), (0, c_pad - co)))
        w_r_p = jnp.pad(w_r, ((0, c_pad - ci), (0, c_pad - co)))
        w_stack.append(jnp.concatenate([w_l_p, w_r_p], axis=0).astype(jnp.bfloat16))
        b_stack.append(jnp.pad(b.reshape(1, -1), ((0, 0), (0, c_pad - co))).astype(jnp.float32))
    w_all = jnp.stack(w_stack, axis=0)              # [L, 2*c_pad, c_pad] bf16
    b_all = jnp.stack(b_stack, axis=0)              # [L, 1, c_pad]       f32

    # Keep the whole weight stack VMEM-resident when it is small; otherwise
    # stream one layer at a time with double buffering.
    weight_bytes_total = num_layers * 2 * c_pad * c_pad * 2
    resident_weights = weight_bytes_total <= (4 << 20)

    single = pl.Buffered(buffer_count=1)            # layer-invariant -> no double buffer
    if resident_weights:
        w_spec = pl.BlockSpec((num_layers, 2 * c_pad, c_pad), lambda l: (0, 0, 0),
                              pipeline_mode=single)
        weight_buf_bytes = weight_bytes_total
    else:
        w_spec = pl.BlockSpec((1, 2 * c_pad, c_pad), lambda l: (l, 0, 0))
        weight_buf_bytes = 2 * 2 * c_pad * c_pad * 2      # double-buffered stream

    # ---- VMEM budget: actual footprint + headroom, capped below physical ----
    footprint = (
        n_pad * n_pad * 2                 # adjacency (1 buffer)
        + n_pad * LANE * 4                # inv_deg (lane-padded, 1 buffer)
        + n_pad * c_pad * 2               # x (1 buffer)
        + n_pad * 2 * c_pad * 2           # [agg | act] scratch
        + 2 * n_pad * c_pad_out * 4       # output (double-buffered)
        + weight_buf_bytes
        + num_layers * 8 * c_pad * 4      # biases (sublane-padded)
    )
    try:
        vmem_phys = int(pltpu.get_tpu_info().vmem_capacity_bytes)
    except Exception:
        vmem_phys = 64 << 20              # conservative (v7x per-TC)
    vmem_limit = int(min(max(footprint + (4 << 20), 32 << 20), vmem_phys * 7 // 8))

    kernel = functools.partial(_fused_sage_kernel,
                               num_layers=num_layers,
                               resident_weights=resident_weights)
    out_p = pl.pallas_call(
        kernel,
        out_shape=jax.ShapeDtypeStruct((n_pad, c_pad_out), jnp.float32),
        grid_spec=pltpu.PrefetchScalarGridSpec(
            num_scalar_prefetch=0,
            grid=(num_layers,),
            in_specs=[
                pl.BlockSpec((n_pad, n_pad), lambda l: (0, 0), pipeline_mode=single),   # adj
                pl.BlockSpec((n_pad, 1), lambda l: (0, 0), pipeline_mode=single),       # inv_deg
                pl.BlockSpec((n_pad, c_pad), lambda l: (0, 0), pipeline_mode=single),   # x
                w_spec,                                                                 # W (resident / streamed)
                pl.BlockSpec((num_layers, 1, c_pad), lambda l: (0, 0, 0),
                             pipeline_mode=single),                                     # all biases, resident
            ],
            out_specs=pl.BlockSpec((n_pad, c_pad_out), lambda l: (0, 0)),
            scratch_shapes=[pltpu.VMEM((n_pad, 2 * c_pad), jnp.bfloat16)],   # [agg | act] carry
        ),
        compiler_params=pltpu.CompilerParams(
            dimension_semantics=("arbitrary",),   # layer axis is sequential
            vmem_limit_bytes=vmem_limit,
        ),
    )(adj_bin, inv_deg, x_p, w_all, b_all)

    return out_p[:n, :c_out_final]


# ----------------------------------------------------------------------------
# Parameter init (deterministic, mirrors torch.nn.Linear default init shapes)
# ----------------------------------------------------------------------------
def init_sage_params(key, in_channels, hidden_channels, out_channels, num_layers):
    dims = [in_channels] + [hidden_channels] * (num_layers - 1) + [out_channels]
    params = []
    for i in range(num_layers):
        c_in, c_out = dims[i], dims[i + 1]
        key, k1, k2, k3 = jax.random.split(key, 4)
        bound = 1.0 / math.sqrt(c_in)
        # stored already transposed as [Cin, Cout] for x @ W
        w_l = jax.random.uniform(k1, (c_in, c_out), jnp.float32, -bound, bound)
        w_r = jax.random.uniform(k2, (c_in, c_out), jnp.float32, -bound, bound)
        b = jax.random.uniform(k3, (c_out,), jnp.float32, -bound, bound)
        params.append((w_l, w_r, b))
    return params


# ----------------------------------------------------------------------------
# References in plain JAX
# ----------------------------------------------------------------------------
def sage_forward_ref_f32(x, adj, params):
    num_layers = len(params)
    deg = jnp.sum(adj, axis=-1, keepdims=True)
    adj_norm = adj / jnp.maximum(deg, 1.0)
    h = x
    for i, (w_l, w_r, b) in enumerate(params):
        h = (adj_norm @ h) @ w_l + h @ w_r + b
        if i != num_layers - 1:
            h = jnp.maximum(h, 0.0)
    return h


def sage_forward_ref_bf16(x, adj, params):
    """Same math as the kernel: binary bf16 adjacency, f32 inv-deg scaling,
    bf16 operands into the weight matmuls, f32 accumulation."""
    num_layers = len(params)
    deg = jnp.sum(adj, axis=-1, keepdims=True)
    inv_deg = 1.0 / jnp.maximum(deg, 1.0)
    adj_b = adj.astype(jnp.bfloat16)
    h = x.astype(jnp.bfloat16)
    out = None
    for i, (w_l, w_r, b) in enumerate(params):
        agg = jnp.dot(adj_b, h, preferred_element_type=jnp.float32) * inv_deg
        agg = agg.astype(jnp.bfloat16)
        out = (
            jnp.dot(agg, w_l.astype(jnp.bfloat16), preferred_element_type=jnp.float32)
            + jnp.dot(h, w_r.astype(jnp.bfloat16), preferred_element_type=jnp.float32)
            + b
        )
        if i != num_layers - 1:
            h = jnp.maximum(out, 0.0).astype(jnp.bfloat16)
    return out


if __name__ == "__main__":
    key = jax.random.PRNGKey(0)
    k_x, k_adj, k_p = jax.random.split(key, 3)

    num_nodes = 64
    in_channels, hidden_channels, out_channels = 32, 32, 16
    num_layers = 3
    dropout = 0.5  # unused at inference

    x = jax.random.normal(k_x, (num_nodes, in_channels), jnp.float32)
    # random sparse-ish 0/1 adjacency; some nodes may be isolated
    adj = (jax.random.uniform(k_adj, (num_nodes, num_nodes)) < 0.1).astype(jnp.float32)
    adj = adj * (1.0 - jnp.eye(num_nodes, dtype=jnp.float32))  # no self loops

    params = init_sage_params(k_p, in_channels, hidden_channels, out_channels, num_layers)

    out = sage_forward(x, adj, params)
    out = jax.block_until_ready(out)
    assert out.shape == (num_nodes, out_channels)

    # exact-math check (same bf16 casts as the kernel, f32 accumulation).
    # NOTE: agg is intentionally rounded to bf16 before the weight matmul
    # (double rounding vs the f32 PyG semantics); hence the looser f32 check.
    ref_bf16 = sage_forward_ref_bf16(x, adj, params)
    assert jnp.allclose(out, ref_bf16, atol=1e-2, rtol=1e-2), "mismatch vs bf16 reference"

    ref_f32 = sage_forward_ref_f32(x, adj, params)
    assert jnp.allclose(out, ref_f32, atol=5e-2, rtol=5e-2), "mismatch vs f32 reference"

    print("KERNEL_OK")
</pallas_src>

<mosaic_0001>
module attributes {stable_mosaic.version = 11 : i64} {
  func.func @_fused_sage_kernel(%arg0: i32, %arg1: memref<128x128xbf16, #tpu.memory_space<vmem>>, %arg2: memref<128x1xf32, #tpu.memory_space<vmem>>, %arg3: memref<128x128xbf16, #tpu.memory_space<vmem>>, %arg4: memref<3x256x128xbf16, #tpu.memory_space<vmem>>, %arg5: memref<3x1x128xf32, #tpu.memory_space<vmem>>, %arg6: memref<128x128xf32, #tpu.memory_space<vmem>>, %arg7: memref<128x256xbf16, #tpu.memory_space<vmem>>) attributes {dimension_semantics = [#tpu.dimension_semantics<arbitrary>], iteration_bounds = array<i64: 3>, scalar_prefetch = 0 : i64, scratch_operands = 1 : i64, tpu.core_type = #tpu.core_type<tc>, window_params = [{pipeline_mode = #tpu.pipeline_mode<synchronous>, transform_indices = @transform_0, window_bounds = array<i64: 128, 128>}, {pipeline_mode = #tpu.pipeline_mode<synchronous>, transform_indices = @transform_1, window_bounds = array<i64: 128, 1>}, {pipeline_mode = #tpu.pipeline_mode<synchronous>, transform_indices = @transform_2, window_bounds = array<i64: 128, 128>}, {pipeline_mode = #tpu.pipeline_mode<synchronous>, transform_indices = @transform_3, window_bounds = array<i64: 3, 256, 128>}, {pipeline_mode = #tpu.pipeline_mode<synchronous>, transform_indices = @transform_4, window_bounds = array<i64: 3, 1, 128>}, {pipeline_mode = #tpu.pipeline_mode<synchronous>, transform_indices = @transform_5, window_bounds = array<i64: 128, 128>}]} {
    %c0_i32 = arith.constant 0 : i32
    %0 = arith.cmpi eq, %arg0, %c0_i32 : i32
    %1 = arith.extui %0 : i1 to i32
    %c0_i32_0 = arith.constant 0 : i32
    %2 = arith.cmpi ne, %1, %c0_i32_0 : i32
    scf.if %2 {
      %c0_17 = arith.constant 0 : index
      %c0_18 = arith.constant 0 : index
      %27 = vector.load %arg3[%c0_17, %c0_18] : memref<128x128xbf16, #tpu.memory_space<vmem>>, vector<128x128xbf16>
      %c0_19 = arith.constant 0 : index
      %c128_20 = arith.constant 128 : index
      %28 = vector.load %arg7[%c0_19, %c128_20] : memref<128x256xbf16, #tpu.memory_space<vmem>>, vector<128x128xbf16>
      tpu.vector_store %arg7[%c0_19, %c128_20], %27 {strides = array<i32>} : memref<128x256xbf16, #tpu.memory_space<vmem>>, vector<128x128xbf16>,
    } else {
    }
    %c0 = arith.constant 0 : index
    %c128 = arith.constant 128 : index
    %3 = vector.load %arg7[%c0, %c128] : memref<128x256xbf16, #tpu.memory_space<vmem>>, vector<128x128xbf16>
    %c0_1 = arith.constant 0 : index
    %c0_2 = arith.constant 0 : index
    %4 = vector.load %arg1[%c0_1, %c0_2] : memref<128x128xbf16, #tpu.memory_space<vmem>>, vector<128x128xbf16>
    %cst = arith.constant dense<0.000000e+00> : vector<128x128xf32>
    %5 = tpu.matmul %4, %3, %cst {dimension_numbers = #tpu.dot_dimension_numbers<[1], [0], [0], [1], [0, 0, 1, 1], [], []>} : vector<128x128xbf16>, vector<128x128xbf16>, vector<128x128xf32> -> vector<128x128xf32>
    %c0_3 = arith.constant 0 : index
    %c0_4 = arith.constant 0 : index
    %6 = vector.load %arg2[%c0_3, %c0_4] : memref<128x1xf32, #tpu.memory_space<vmem>>, vector<128x1xf32>
    %7 = vector.broadcast %6 : vector<128x1xf32> to vector<128x128xf32>
    %8 = arith.mulf %5, %7 : vector<128x128xf32>
    %9 = arith.truncf %8 : vector<128x128xf32> to vector<128x128xbf16>
    %c0_5 = arith.constant 0 : index
    %c0_6 = arith.constant 0 : index
    %10 = vector.load %arg7[%c0_5, %c0_6] : memref<128x256xbf16, #tpu.memory_space<vmem>>, vector<128x128xbf16>
    tpu.vector_store %arg7[%c0_5, %c0_6], %9 {strides = array<i32>} : memref<128x256xbf16, #tpu.memory_space<vmem>>, vector<128x128xbf16>,
    %11 = arith.index_cast %arg0 : i32 to index
    %c0_7 = arith.constant 0 : index
    %c0_8 = arith.constant 0 : index
    %12 = vector.load %arg4[%11, %c0_7, %c0_8] : memref<3x256x128xbf16, #tpu.memory_space<vmem>>, vector<1x256x128xbf16>
    %13 = vector.shape_cast %12 : vector<1x256x128xbf16> to vector<256x128xbf16>
    %14 = arith.index_cast %arg0 : i32 to index
    %c0_9 = arith.constant 0 : index
    %c0_10 = arith.constant 0 : index
    %15 = vector.load %arg5[%14, %c0_9, %c0_10] : memref<3x1x128xf32, #tpu.memory_space<vmem>>, vector<1x1x128xf32>
    %16 = vector.shape_cast %15 : vector<1x1x128xf32> to vector<1x128xf32>
    %c0_11 = arith.constant 0 : index
    %c0_12 = arith.constant 0 : index
    %17 = vector.load %arg7[%c0_11, %c0_12] : memref<128x256xbf16, #tpu.memory_space<vmem>>, vector<128x256xbf16>
    %cst_13 = arith.constant dense<0.000000e+00> : vector<128x128xf32>
    %18 = tpu.matmul %17, %13, %cst_13 {dimension_numbers = #tpu.dot_dimension_numbers<[1], [0], [0], [1], [0, 0, 1, 1], [], []>} : vector<128x256xbf16>, vector<256x128xbf16>, vector<128x128xf32> -> vector<128x128xf32>
    %19 = vector.broadcast %16 : vector<1x128xf32> to vector<128x128xf32>
    %20 = arith.addf %18, %19 : vector<128x128xf32>
    %c2_i32 = arith.constant 2 : i32
    %21 = arith.cmpi slt, %arg0, %c2_i32 : i32
    %22 = arith.extui %21 : i1 to i32
    %c0_i32_14 = arith.constant 0 : i32
    %23 = arith.cmpi ne, %22, %c0_i32_14 : i32
    scf.if %23 {
      %cst_17 = arith.constant 0.000000e+00 : f32
      %27 = vector.broadcast %cst_17 : f32 to vector<128x128xf32>
      %28 = arith.maximumf %20, %27 : vector<128x128xf32>
      %29 = arith.truncf %28 : vector<128x128xf32> to vector<128x128xbf16>
      %c0_18 = arith.constant 0 : index
      %c128_19 = arith.constant 128 : index
      %30 = vector.load %arg7[%c0_18, %c128_19] : memref<128x256xbf16, #tpu.memory_space<vmem>>, vector<128x128xbf16>
      tpu.vector_store %arg7[%c0_18, %c128_19], %29 {strides = array<i32>} : memref<128x256xbf16, #tpu.memory_space<vmem>>, vector<128x128xbf16>,
    } else {
    }
    %c2_i32_15 = arith.constant 2 : i32
    %24 = arith.cmpi eq, %arg0, %c2_i32_15 : i32
    %25 = arith.extui %24 : i1 to i32
    %c0_i32_16 = arith.constant 0 : i32
    %26 = arith.cmpi ne, %25, %c0_i32_16 : i32
    scf.if %26 {
      %c0_17 = arith.constant 0 : index
      %c0_18 = arith.constant 0 : index
      %27 = vector.load %arg6[%c0_17, %c0_18] : memref<128x128xf32, #tpu.memory_space<vmem>>, vector<128x128xf32>
      tpu.vector_store %arg6[%c0_17, %c0_18], %20 {strides = array<i32>} : memref<128x128xf32, #tpu.memory_space<vmem>>, vector<128x128xf32>,
    } else {
    }
    return
  }
  func.func @transform_0(%arg0: i32) -> (i32, i32) {
    %c0_i32 = arith.constant 0 : i32
    %c0_i32_0 = arith.constant 0 : i32
    %c0_i32_1 = arith.constant 0 : i32
    return %c0_i32, %c0_i32_0 : i32, i32
  }
  func.func @transform_1(%arg0: i32) -> (i32, i32) {
    %c0_i32 = arith.constant 0 : i32
    %c0_i32_0 = arith.constant 0 : i32
    %c0_i32_1 = arith.constant 0 : i32
    return %c0_i32, %c0_i32_0 : i32, i32
  }
  func.func @transform_2(%arg0: i32) -> (i32, i32) {
    %c0_i32 = arith.constant 0 : i32
    %c0_i32_0 = arith.constant 0 : i32
    %c0_i32_1 = arith.constant 0 : i32
    return %c0_i32, %c0_i32_0 : i32, i32
  }
  func.func @transform_3(%arg0: i32) -> (i32, i32, i32) {
    %c0_i32 = arith.constant 0 : i32
    %c0_i32_0 = arith.constant 0 : i32
    %c0_i32_1 = arith.constant 0 : i32
    %c0_i32_2 = arith.constant 0 : i32
    return %c0_i32, %c0_i32_0, %c0_i32_1 : i32, i32, i32
  }
  func.func @transform_4(%arg0: i32) -> (i32, i32, i32) {
    %c0_i32 = arith.constant 0 : i32
    %c0_i32_0 = arith.constant 0 : i32
    %c0_i32_1 = arith.constant 0 : i32
    %c0_i32_2 = arith.constant 0 : i32
    return %c0_i32, %c0_i32_0, %c0_i32_1 : i32, i32, i32
  }
  func.func @transform_5(%arg0: i32) -> (i32, i32) {
    %c0_i32 = arith.constant 0 : i32
    %c0_i32_0 = arith.constant 0 : i32
    %c0_i32_1 = arith.constant 0 : i32
    return %c0_i32, %c0_i32_0 : i32, i32
  }
}

</mosaic_0001>

<llo_original>
// kernel: tpu_custom_call.1
$region0: #{tpu_custom_call.1}
  #allocation0 [shape = 'u32[]', space=smem, size = 0x4, offset = 0x4, fixed_abs, tag = 'smem constant byte address 0x4 - core index']
  #allocation1 [shape = 'u32[144,128]{1,0:T(1,128)}', space=vmem, size = 0x12000, scoped, tag = 'internal scratch']
  #allocation2 [shape = 'bf16[128,256]{1,0:T(16,128)(2,1)}', space=vmem, size = 0x10000, scoped, tag = 'scratch operand']
  %s0 = inlined_call_operand.vmem [shape: bf16[128,128], index: 0, kind: input, shape index: {}]
  %s1 = inlined_call_operand.vmem [shape: f32[128,1], index: 1, kind: input, shape index: {}]
  %s2 = inlined_call_operand.vmem [shape: bf16[128,128], index: 2, kind: input, shape index: {}]
  %s3 = inlined_call_operand.hbm [shape: bf16[3,256,128], index: 3, kind: input, shape index: {}]
  %s4 = inlined_call_operand.vmem [shape: f32[3,1,128], index: 4, kind: input, shape index: {}]
  %s5 = inlined_call_operand.hbm [shape: f32[128,128], index: 5, kind: output, shape index: {}]
  %s6 = sld [smem:[#allocation0]]
  $region69: #{tpu_custom_call.1} parent=0
    _
  %s8 = ssub.s32 1, %s6
  %s9 = scalar_select 0, %s8, %s6
  $region1: #{tpu_custom_call.1} parent=0
    #allocation3 [shape = 'u8[196608]{0}', space=vmem, size = 0x30000, scoped, tag = 'input window, operand 3, single buffered']
    #allocation4 [shape = 's32[2]{0}', space=sflag, size = 0x8, scoped, tag = 'scoped memory for tpu_custom_call.1']
    #allocation5 [shape = 's32[2]{0}', space=sflag, size = 0x8, scoped, tag = 'scoped memory for tpu_custom_call.1']
    #allocation6 [shape = 'u8[65536]{0}', space=vmem, size = 0x10000, scoped, tag = 'output window, operand 0, single buffered']
    %10 = vsyncpa [#allocation4], 0
    %11 = vsyncpa [#allocation5], 0
    loop: start=0, step=1, limit=5
    $region2: #{tpu_custom_call.1} parent=1 // loop_pre_header
      _
    $region3: #{tpu_custom_call.1} parent=1 // loop_header
      %s13 = sphi 0, %s17
      %p14 = scmp.ge.s32.totalorder %s13, 5
      %s21 = sphi 0, %s21
      %s23 = sphi 0, %s21
      %s24 = sphi 0, %s23
      %s38 = sphi 0, %s24
      %s42 = sphi 0, %s42
      %s44 = sphi 0, %s42
      %s45 = sphi 0, %s44
      %s59 = sphi 0, %s45
      %s63 = sphi 0, %s63
      %s65 = sphi 0, %s63
      %s66 = sphi 0, %s65
      %s80 = sphi 0, %s66
      %s84 = sphi 0, %s84
      %s86 = sphi 0, %s84
      %s87 = sphi 0, %s86
      %s101 = sphi 0, %s87
      %s105 = sphi 0, %s105
      %s107 = sphi 0, %s105
      %s108 = sphi 0, %s107
      %s122 = sphi 0, %s108
      %s126 = sphi 0, %s126
      %s128 = sphi 0, %s126
      %s129 = sphi 0, %s128
      %s143 = sphi 0, %s129
    $region4: #{tpu_custom_call.1} parent=1 // loop_header_branch
      %16 = sbr.rel (%p14) target = $region8
    $region5: #{tpu_custom_call.1} parent=1 // loop_body
      %s18 = ssub.s32 %s13, 1
      %s19 = ssub.s32 %s13, 2
      %s20 = sadd.s32 %s13, 1
      %s22 = sadd.s32 %s21, 1
      %p25 = scmp.eq.s32.totalorder %s13, 2
      %p26 = scmp.ne.s32.totalorder %s21, %s23
      %p27 = scmp.eq.s32.totalorder %s13, 0
      %p28 = por %p26, %p27
      %p29 = scmp.ne.s32.totalorder %s21, %s23
      %p30 = scmp.eq.s32.totalorder %s18, 2
      %p31 = por %p29, %p30
      %p32 = scmp.ne.s32.totalorder %s23, %s24
      %p33 = scmp.eq.s32.totalorder %s18, 0
      %p34 = por %p32, %p33
      %p35 = scmp.ne.s32.totalorder %s23, %s24
      %p36 = scmp.eq.s32.totalorder %s19, 2
      %p37 = por %p35, %p36
      %p39 = scmp.ne.s32.totalorder %s24, %s38
      %p40 = scmp.eq.s32.totalorder %s19, 0
      %p41 = por %p39, %p40
      %s43 = sadd.s32 %s42, 1
      %p46 = scmp.eq.s32.totalorder %s13, 2
      %p47 = scmp.ne.s32.totalorder %s42, %s44
      %p48 = scmp.eq.s32.totalorder %s13, 0
      %p49 = por %p47, %p48
      %p50 = scmp.ne.s32.totalorder %s42, %s44
      %p51 = scmp.eq.s32.totalorder %s18, 2
      %p52 = por %p50, %p51
      %p53 = scmp.ne.s32.totalorder %s44, %s45
      %p54 = scmp.eq.s32.totalorder %s18, 0
      %p55 = por %p53, %p54
      %p56 = scmp.ne.s32.totalorder %s44, %s45
      %p57 = scmp.eq.s32.totalorder %s19, 2
      %p58 = por %p56, %p57
      %p60 = scmp.ne.s32.totalorder %s45, %s59
      %p61 = scmp.eq.s32.totalorder %s19, 0
      %p62 = por %p60, %p61
      %s64 = sadd.s32 %s63, 1
      %p67 = scmp.eq.s32.totalorder %s13, 2
      %p68 = scmp.ne.s32.totalorder %s63, %s65
      %p69 = scmp.eq.s32.totalorder %s13, 0
      %p70 = por %p68, %p69
      %p71 = scmp.ne.s32.totalorder %s63, %s65
      %p72 = scmp.eq.s32.totalorder %s18, 2
      %p73 = por %p71, %p72
      %p74 = scmp.ne.s32.totalorder %s65, %s66
      %p75 = scmp.eq.s32.totalorder %s18, 0
      %p76 = por %p74, %p75
      %p77 = scmp.ne.s32.totalorder %s65, %s66
      %p78 = scmp.eq.s32.totalorder %s19, 2
      %p79 = por %p77, %p78
      %p81 = scmp.ne.s32.totalorder %s66, %s80
      %p82 = scmp.eq.s32.totalorder %s19, 0
      %p83 = por %p81, %p82
      %s85 = sadd.s32 %s84, 1
      %p88 = scmp.eq.s32.totalorder %s13, 2
      %p89 = scmp.ne.s32.totalorder %s84, %s86
      %p90 = scmp.eq.s32.totalorder %s13, 0
      %p91 = por %p89, %p90
      %p92 = scmp.ne.s32.totalorder %s84, %s86
      %p93 = scmp.eq.s32.totalorder %s18, 2
      %p94 = por %p92, %p93
      %p95 = scmp.ne.s32.totalorder %s86, %s87
      %p96 = scmp.eq.s32.totalorder %s18, 0
      %p97 = por %p95, %p96
      %p98 = scmp.ne.s32.totalorder %s86, %s87
      %p99 = scmp.eq.s32.totalorder %s19, 2
      %p100 = por %p98, %p99
      %p102 = scmp.ne.s32.totalorder %s87, %s101
      %p103 = scmp.eq.s32.totalorder %s19, 0
      %p104 = por %p102, %p103
      %s106 = sadd.s32 %s105, 1
      %p109 = scmp.eq.s32.totalorder %s13, 2
      %p110 = scmp.ne.s32.totalorder %s105, %s107
      %p111 = scmp.eq.s32.totalorder %s13, 0
      %p112 = por %p110, %p111
      %p113 = scmp.ne.s32.totalorder %s105, %s107
      %p114 = scmp.eq.s32.totalorder %s18, 2
      %p115 = por %p113, %p114
      %p116 = scmp.ne.s32.totalorder %s107, %s108
      %p117 = scmp.eq.s32.totalorder %s18, 0
      %p118 = por %p116, %p117
      %p119 = scmp.ne.s32.totalorder %s107, %s108
      %p120 = scmp.eq.s32.totalorder %s19, 2
      %p121 = por %p119, %p120
      %p123 = scmp.ne.s32.totalorder %s108, %s122
      %p124 = scmp.eq.s32.totalorder %s19, 0
      %p125 = por %p123, %p124
      %s127 = sadd.s32 %s126, 1
      %p130 = scmp.eq.s32.totalorder %s13, 2
      %p131 = scmp.ne.s32.totalorder %s126, %s128
      %p132 = scmp.eq.s32.totalorder %s13, 0
      %p133 = por %p131, %p132
      %p134 = scmp.ne.s32.totalorder %s126, %s128
      %p135 = scmp.eq.s32.totalorder %s18, 2
      %p136 = por %p134, %p135
      %p137 = scmp.ne.s32.totalorder %s128, %s129
      %p138 = scmp.eq.s32.totalorder %s18, 0
      %p139 = por %p137, %p138
      %p140 = scmp.ne.s32.totalorder %s128, %s129
      %p141 = scmp.eq.s32.totalorder %s19, 2
      %p142 = por %p140, %p141
      %p144 = scmp.ne.s32.totalorder %s129, %s143
      %p145 = scmp.eq.s32.totalorder %s19, 0
      %p146 = por %p144, %p145
      %p147 = scmp.le.s32.totalorder 1, %s13
      %p148 = scmp.lt.s32.totalorder %s13, 4
      %p149 = pnand %p147, %p148
      %p150 = pneg %p149
      // Predicated region
      $region9: #{tpu_custom_call.1} parent=5 // pred_check
        _
      $region10: #{tpu_custom_call.1} parent=5 // pred_check_branch
        %152 = sbr.rel (%p149) target = $region12
      $region11: #{tpu_custom_call.1} parent=5 // pred_region
        %s153 = ssub.s32 %s13, 1
        // Predicated region
        $region13: #{tpu_custom_call.1} parent=11 // pred_check
          %p154 = pneg %p34
        $region14: #{tpu_custom_call.1} parent=11 // pred_check_branch
          %156 = sbr.rel (%p154) target = $region16
        $region15: #{tpu_custom_call.1} parent=11 // pred_region
          _
        $region16: #{tpu_custom_call.1} parent=11 // pred_fallthru
          _
        // Predicated region
        $region17: #{tpu_custom_call.1} parent=11 // pred_check
          %p157 = pneg %p55
        $region18: #{tpu_custom_call.1} parent=11 // pred_check_branch
          %159 = sbr.rel (%p157) target = $region20
        $region19: #{tpu_custom_call.1} parent=11 // pred_region
          _
        $region20: #{tpu_custom_call.1} parent=11 // pred_fallthru
          _
        // Predicated region
        $region21: #{tpu_custom_call.1} parent=11 // pred_check
          %p160 = pneg %p76
        $region22: #{tpu_custom_call.1} parent=11 // pred_check_branch
          %162 = sbr.rel (%p160) target = $region24
        $region23: #{tpu_custom_call.1} parent=11 // pred_region
          _
        $region24: #{tpu_custom_call.1} parent=11 // pred_fallthru
          _
        // Predicated region
        $region25: #{tpu_custom_call.1} parent=11 // pred_check
          %p163 = pneg %p97
        $region26: #{tpu_custom_call.1} parent=11 // pred_check_branch
          %165 = sbr.rel (%p163) target = $region28
        $region27: #{tpu_custom_call.1} parent=11 // pred_region
          %s167 = ssub.s32 6144, 6144
          %168 = vsyncadd [#allocation4], %s167
          %s169 = sshll.u32 [#allocation3], 4
          %s170 = int_to_ptr.vmem [resolvable:$true] %s169
          %175 = dma.hbm_to_vmem [thread:$0]  %s3, 6144, %s170, [#allocation4], 64, 64, 4
        $region28: #{tpu_custom_call.1} parent=11 // pred_fallthru
          _
        // Predicated region
        $region29: #{tpu_custom_call.1} parent=11 // pred_check
          %p176 = pneg %p118
        $region30: #{tpu_custom_call.1} parent=11 // pred_check_branch
          %178 = sbr.rel (%p176) target = $region32
        $region31: #{tpu_custom_call.1} parent=11 // pred_region
          _
        $region32: #{tpu_custom_call.1} parent=11 // pred_fallthru
          _
      $region12: #{tpu_custom_call.1} parent=5 // pred_fallthru
        _
      %p179 = scmp.lt.s32.totalorder %s13, 3
      // Predicated region
      $region33: #{tpu_custom_call.1} parent=5 // pred_check
        %p180 = pneg %p179
      $region34: #{tpu_custom_call.1} parent=5 // pred_check_branch
        %182 = sbr.rel (%p180) target = $region36
      $region35: #{tpu_custom_call.1} parent=5 // pred_region
        _
      $region36: #{tpu_custom_call.1} parent=5 // pred_fallthru
        _
      %p183 = scmp.le.s32.totalorder 1, %s13
      %p184 = scmp.lt.s32.totalorder %s13, 4
      %p185 = pnand %p183, %p184
      %p186 = pneg %p185
      // Predicated region
      $region37: #{tpu_custom_call.1} parent=5 // pred_check
        _
      $region38: #{tpu_custom_call.1} parent=5 // pred_check_branch
        %188 = sbr.rel (%p185) target = $region40
      $region39: #{tpu_custom_call.1} parent=5 // pred_region
        %s189 = ssub.s32 %s13, 1
        // Predicated region
        $region41: #{tpu_custom_call.1} parent=39 // pred_check
          %p190 = pneg %p97
        $region42: #{tpu_custom_call.1} parent=39 // pred_check_branch
          %192 = sbr.rel (%p190) target = $region44
        $region43: #{tpu_custom_call.1} parent=39 // pred_region
          %193 = dma.done [#allocation4], 6144
        $region44: #{tpu_custom_call.1} parent=39 // pred_fallthru
          _
        %p194 = pneg %p34
        %p195 = pneg %p31
        %p196 = pneg %p55
        %p197 = pneg %p52
        %p198 = pneg %p76
        %p199 = pneg %p73
        %p200 = pneg %p97
        %p201 = pneg %p94
        %p202 = pneg %p118
        %p203 = pneg %p115
        %p204 = pneg %p139
        %p205 = pneg %p136
        %p207 = scmp.eq.s32.totalorder %s18, 0
        // Predicated region
        $region45: #{tpu_custom_call.1} parent=39 // pred_check
          %p208 = pneg %p207
        $region46: #{tpu_custom_call.1} parent=39 // pred_check_branch
          %210 = sbr.rel (%p208) target = $region48
        $region47: #{tpu_custom_call.1} parent=39 // pred_region
          %v211 = vld [vmem:[%s2] sm:$0xf]
          %v212 = vld [vmem:[%s2 + $0x4] sm:$0xf]
          %v213 = vld [vmem:[%s2 + $0x8] sm:$0xf]
          %v214 = vld [vmem:[%s2 + $0xc] sm:$0xf]
          %v215 = vld [vmem:[%s2 + $0x10] sm:$0xf]
          %v216 = vld [vmem:[%s2 + $0x14] sm:$0xf]
          %v217 = vld [vmem:[%s2 + $0x18] sm:$0xf]
          %v218 = vld [vmem:[%s2 + $0x1c] sm:$0xf]
          %v219 = vld [vmem:[%s2 + $0x20] sm:$0xf]
          %v220 = vld [vmem:[%s2 + $0x24] sm:$0xf]
          %v221 = vld [vmem:[%s2 + $0x28] sm:$0xf]
          %v222 = vld [vmem:[%s2 + $0x2c] sm:$0xf]
          %v223 = vld [vmem:[%s2 + $0x30] sm:$0xf]
          %v224 = vld [vmem:[%s2 + $0x34] sm:$0xf]
          %v225 = vld [vmem:[%s2 + $0x38] sm:$0xf]
          %v226 = vld [vmem:[%s2 + $0x3c] sm:$0xf]
          %v243 = vunpack.c.l.b16 %v211
          %v244 = vunpack.c.l.b16 %v212
          %v245 = vunpack.c.l.b16 %v213
          %v246 = vunpack.c.l.b16 %v214
          %v247 = vunpack.c.l.b16 %v215
          %v248 = vunpack.c.l.b16 %v216
          %v249 = vunpack.c.l.b16 %v217
          %v250 = vunpack.c.l.b16 %v218
          %v251 = vunpack.c.l.b16 %v219
          %v252 = vunpack.c.l.b16 %v220
          %v253 = vunpack.c.l.b16 %v221
          %v254 = vunpack.c.l.b16 %v222
          %v255 = vunpack.c.l.b16 %v223
          %v256 = vunpack.c.l.b16 %v224
          %v257 = vunpack.c.l.b16 %v225
          %v258 = vunpack.c.l.b16 %v226
          %v259 = vpack.c.b16 %v244, %v243
          %v260 = vpack.c.b16 %v246, %v245
          %v261 = vpack.c.b16 %v248, %v247
          %v262 = vpack.c.b16 %v250, %v249
          %v263 = vpack.c.b16 %v252, %v251
          %v264 = vpack.c.b16 %v254, %v253
          %v265 = vpack.c.b16 %v256, %v255
          %v266 = vpack.c.b16 %v258, %v257
          %275 = vst [vmem:[#allocation2 + $0x8] sm:$0xff] %v259
          %276 = vst [vmem:[#allocation2 + $0x18] sm:$0xff] %v260
          %277 = vst [vmem:[#allocation2 + $0x28] sm:$0xff] %v261
          %278 = vst [vmem:[#allocation2 + $0x38] sm:$0xff] %v262
          %279 = vst [vmem:[#allocation2 + $0x48] sm:$0xff] %v263
          %280 = vst [vmem:[#allocation2 + $0x58] sm:$0xff] %v264
          %281 = vst [vmem:[#allocation2 + $0x68] sm:$0xff] %v265
          %282 = vst [vmem:[#allocation2 + $0x78] sm:$0xff] %v266
        $region48: #{tpu_custom_call.1} parent=39 // pred_fallthru
          _
        %v283 = vld [vmem:[#allocation2 + $0x8] sm:$0xff]
        %v284 = vld [vmem:[#allocation2 + $0x18] sm:$0xff]
        %v285 = vld [vmem:[#allocation2 + $0x28] sm:$0xff]
        %v286 = vld [vmem:[#allocation2 + $0x38] sm:$0xff]
        %v287 = vld [vmem:[#allocation2 + $0x48] sm:$0xff]
        %v288 = vld [vmem:[#allocation2 + $0x58] sm:$0xff]
        %v289 = vld [vmem:[#allocation2 + $0x68] sm:$0xff]
        %v290 = vld [vmem:[#allocation2 + $0x78] sm:$0xff]
        %v291 = vld [vmem:[%s0] sm:$0xf]
        %v292 = vld [vmem:[%s0 + $0x4] sm:$0xf]
        %v293 = vld [vmem:[%s0 + $0x8] sm:$0xf]
        %v294 = vld [vmem:[%s0 + $0xc] sm:$0xf]
        %v295 = vld [vmem:[%s0 + $0x10] sm:$0xf]
        %v296 = vld [vmem:[%s0 + $0x14] sm:$0xf]
        %v297 = vld [vmem:[%s0 + $0x18] sm:$0xf]
        %v298 = vld [vmem:[%s0 + $0x1c] sm:$0xf]
        %v299 = vld [vmem:[%s0 + $0x20] sm:$0xf]
        %v300 = vld [vmem:[%s0 + $0x24] sm:$0xf]
        %v301 = vld [vmem:[%s0 + $0x28] sm:$0xf]
        %v302 = vld [vmem:[%s0 + $0x2c] sm:$0xf]
        %v303 = vld [vmem:[%s0 + $0x30] sm:$0xf]
        %v304 = vld [vmem:[%s0 + $0x34] sm:$0xf]
        %v305 = vld [vmem:[%s0 + $0x38] sm:$0xf]
        %v306 = vld [vmem:[%s0 + $0x3c] sm:$0xf]
        %v323 = vunpack.c.l.b16 %v291
        %v324 = vunpack.c.l.b16 %v292
        %v325 = vunpack.c.l.b16 %v293
        %v326 = vunpack.c.l.b16 %v294
        %v327 = vunpack.c.l.b16 %v295
        %v328 = vunpack.c.l.b16 %v296
        %v329 = vunpack.c.l.b16 %v297
        %v330 = vunpack.c.l.b16 %v298
        %v331 = vunpack.c.l.b16 %v299
        %v332 = vunpack.c.l.b16 %v300
        %v333 = vunpack.c.l.b16 %v301
        %v334 = vunpack.c.l.b16 %v302
        %v335 = vunpack.c.l.b16 %v303
        %v336 = vunpack.c.l.b16 %v304
        %v337 = vunpack.c.l.b16 %v305
        %v338 = vunpack.c.l.b16 %v306
        %v339 = vpack.c.b16 %v324, %v323
        %v340 = vpack.c.b16 %v326, %v325
        %v341 = vpack.c.b16 %v328, %v327
        %v342 = vpack.c.b16 %v330, %v329
        %v343 = vpack.c.b16 %v332, %v331
        %v344 = vpack.c.b16 %v334, %v333
        %v345 = vpack.c.b16 %v336, %v335
        %v346 = vpack.c.b16 %v338, %v337
        %355 = vmatprep.subr.bf16.mxu0 0
        %356 = vmatpush1.bf16.msra.mxu0 %v283
        %357 = vmatprep.subr.bf16.mxu0 0
        %358 = vmatpush1.bf16.msra.mxu0 %v284
        %359 = vmatprep.subr.bf16.mxu0 0
        %360 = vmatpush1.bf16.msra.mxu0 %v285
        %361 = vmatprep.subr.bf16.mxu0 0
        %362 = vmatpush1.bf16.msra.mxu0 %v286
        %363 = vmatprep.subr.bf16.mxu0 0
        %364 = vmatpush1.bf16.msra.mxu0 %v287
        %365 = vmatprep.subr.bf16.mxu0 0
        %366 = vmatpush1.bf16.msra.mxu0 %v288
        %367 = vmatprep.subr.bf16.mxu0 0
        %368 = vmatpush1.bf16.msra.mxu0 %v289
        %369 = vmatprep.subr.bf16.mxu0 0
        %370 = vmatpush1.bf16.msra.mxu0 %v290
        %371 = vmatprep.subr.bf16.mxu0 0
        %372 = vmatpush1.bf16.msra.mxu0 0
        %373 = vmatprep.subr.bf16.mxu0 0
        %374 = vmatpush1.bf16.msra.mxu0 0
        %375 = vmatprep.subr.bf16.mxu0 0
        %376 = vmatpush1.bf16.msra.mxu0 0
        %377 = vmatprep.subr.bf16.mxu0 0
        %378 = vmatpush1.bf16.msra.mxu0 0
        %379 = vmatprep.subr.bf16.mxu0 0
        %380 = vmatpush1.bf16.msra.mxu0 0
        %381 = vmatprep.subr.bf16.mxu0 0
        %382 = vmatpush1.bf16.msra.mxu0 0
        %383 = vmatprep.subr.bf16.mxu0 0
        %384 = vmatpush1.bf16.msra.mxu0 0
        %385 = vmatprep.subr.bf16.mxu0 0
        %386 = vmatpush1.bf16.msra.mxu0 0
        %387 = vmatprep.mubr.bf16.mxu0 0
        %388 = vmatmul.mubr.bf16.gmra.mrb[0].mxu0 %v339
        %v389 = vpop.f32.mrb[0].mxu0
        %v390 = vadd.f32 0.0, %v389
        %v391 = vpop.f32.mrb[0].mxu0
        %v392 = vpop.f32.mrb[0].mxu0
        %v393 = vadd.f32 0.0, %v392
        %v394 = vpop.f32.mrb[0].mxu0
        %395 = vmatprep.mubr.bf16.mxu0 0
        %396 = vmatmul.mubr.bf16.gmra.mrb[0].mxu0 %v340
        %v397 = vpop.f32.mrb[0].mxu0
        %v398 = vadd.f32 0.0, %v397
        %v399 = vpop.f32.mrb[0].mxu0
        %v400 = vpop.f32.mrb[0].mxu0
        %v401 = vadd.f32 0.0, %v400
        %v402 = vpop.f32.mrb[0].mxu0
        %403 = vmatprep.mubr.bf16.mxu0 0
        %404 = vmatmul.mubr.bf16.gmra.mrb[0].mxu0 %v341
        %v405 = vpop.f32.mrb[0].mxu0
        %v406 = vadd.f32 0.0, %v405
        %v407 = vpop.f32.mrb[0].mxu0
        %v408 = vpop.f32.mrb[0].mxu0
        %v409 = vadd.f32 0.0, %v408
        %v410 = vpop.f32.mrb[0].mxu0
        %411 = vmatprep.mubr.bf16.mxu0 0
        %412 = vmatmul.mubr.bf16.gmra.mrb[0].mxu0 %v342
        %v413 = vpop.f32.mrb[0].mxu0
        %v414 = vadd.f32 0.0, %v413
        %v415 = vpop.f32.mrb[0].mxu0
        %v416 = vpop.f32.mrb[0].mxu0
        %v417 = vadd.f32 0.0, %v416
        %v418 = vpop.f32.mrb[0].mxu0
        %419 = vmatprep.mubr.bf16.mxu0 0
        %420 = vmatmul.mubr.bf16.gmra.mrb[0].mxu0 %v343
        %v421 = vpop.f32.mrb[0].mxu0
        %v422 = vadd.f32 0.0, %v421
        %v423 = vpop.f32.mrb[0].mxu0
        %v424 = vpop.f32.mrb[0].mxu0
        %v425 = vadd.f32 0.0, %v424
        %v426 = vpop.f32.mrb[0].mxu0
        %427 = vmatprep.mubr.bf16.mxu0 0
        %428 = vmatmul.mubr.bf16.gmra.mrb[0].mxu0 %v344
        %v429 = vpop.f32.mrb[0].mxu0
        %v430 = vadd.f32 0.0, %v429
        %v431 = vpop.f32.mrb[0].mxu0
        %v432 = vpop.f32.mrb[0].mxu0
        %v433 = vadd.f32 0.0, %v432
        %v434 = vpop.f32.mrb[0].mxu0
        %435 = vmatprep.mubr.bf16.mxu0 0
        %436 = vmatmul.mubr.bf16.gmra.mrb[0].mxu0 %v345
        %v437 = vpop.f32.mrb[0].mxu0
        %v438 = vadd.f32 0.0, %v437
        %v439 = vpop.f32.mrb[0].mxu0
        %v440 = vpop.f32.mrb[0].mxu0
        %v441 = vadd.f32 0.0, %v440
        %v442 = vpop.f32.mrb[0].mxu0
        %443 = vmatprep.mubr.bf16.mxu0 0
        %444 = vmatmul.mubr.bf16.gmra.mrb[0].mxu0 %v346
        %v445 = vpop.f32.mrb[0].mxu0
        %v446 = vadd.f32 0.0, %v445
        %v447 = vpop.f32.mrb[0].mxu0
        %v448 = vpop.f32.mrb[0].mxu0
        %v449 = vadd.f32 0.0, %v448
        %v450 = vpop.f32.mrb[0].mxu0
        %451 = vdwg.mxu0
        %v452 = vld [vmem:[%s1] sm:$0xff]
        %v453 = vld [vmem:[%s1 + $0x8] sm:$0xff]
        %v454 = vld [vmem:[%s1 + $0x10] sm:$0xff]
        %v455 = vld [vmem:[%s1 + $0x18] sm:$0xff]
        %v456 = vld [vmem:[%s1 + $0x20] sm:$0xff]
        %v457 = vld [vmem:[%s1 + $0x28] sm:$0xff]
        %v458 = vld [vmem:[%s1 + $0x30] sm:$0xff]
        %v459 = vld [vmem:[%s1 + $0x38] sm:$0xff]
        %v460 = vld [vmem:[%s1 + $0x40] sm:$0xff]
        %v461 = vld [vmem:[%s1 + $0x48] sm:$0xff]
        %v462 = vld [vmem:[%s1 + $0x50] sm:$0xff]
        %v463 = vld [vmem:[%s1 + $0x58] sm:$0xff]
        %v464 = vld [vmem:[%s1 + $0x60] sm:$0xff]
        %v465 = vld [vmem:[%s1 + $0x68] sm:$0xff]
        %v466 = vld [vmem:[%s1 + $0x70] sm:$0xff]
        %v467 = vld [vmem:[%s1 + $0x78] sm:$0xff]
        %469 = vset.pattern.permute.xlu0 0
        %470 = vperm.xlu0 %469, %v452
        %v471 = vpop.permute.xlu0 %470
        %474 = vset.pattern.permute.xlu0 0
        %475 = vperm.xlu0 %474, %v453
        %v476 = vpop.permute.xlu0 %475
        %479 = vset.pattern.permute.xlu0 0
        %480 = vperm.xlu0 %479, %v454
        %v481 = vpop.permute.xlu0 %480
        %484 = vset.pattern.permute.xlu0 0
        %485 = vperm.xlu0 %484, %v455
        %v486 = vpop.permute.xlu0 %485
        %489 = vset.pattern.permute.xlu0 0
        %490 = vperm.xlu0 %489, %v456
        %v491 = vpop.permute.xlu0 %490
        %494 = vset.pattern.permute.xlu0 0
        %495 = vperm.xlu0 %494, %v457
        %v496 = vpop.permute.xlu0 %495
        %499 = vset.pattern.permute.xlu0 0
        %500 = vperm.xlu0 %499, %v458
        %v501 = vpop.permute.xlu0 %500
        %504 = vset.pattern.permute.xlu0 0
        %505 = vperm.xlu0 %504, %v459
        %v506 = vpop.permute.xlu0 %505
        %509 = vset.pattern.permute.xlu0 0
        %510 = vperm.xlu0 %509, %v460
        %v511 = vpop.permute.xlu0 %510
        %514 = vset.pattern.permute.xlu0 0
        %515 = vperm.xlu0 %514, %v461
        %v516 = vpop.permute.xlu0 %515
        %519 = vset.pattern.permute.xlu0 0
        %520 = vperm.xlu0 %519, %v462
        %v521 = vpop.permute.xlu0 %520
        %524 = vset.pattern.permute.xlu0 0
        %525 = vperm.xlu0 %524, %v463
        %v526 = vpop.permute.xlu0 %525
        %529 = vset.pattern.permute.xlu0 0
        %530 = vperm.xlu0 %529, %v464
        %v531 = vpop.permute.xlu0 %530
        %534 = vset.pattern.permute.xlu0 0
        %535 = vperm.xlu0 %534, %v465
        %v536 = vpop.permute.xlu0 %535
        %539 = vset.pattern.permute.xlu0 0
        %540 = vperm.xlu0 %539, %v466
        %v541 = vpop.permute.xlu0 %540
        %544 = vset.pattern.permute.xlu0 0
        %545 = vperm.xlu0 %544, %v467
        %v546 = vpop.permute.xlu0 %545
        %v548 = vmul.f32 %v390, %v471
        %v549 = vmul.f32 %v393, %v476
        %v550 = vmul.f32 %v398, %v481
        %v551 = vmul.f32 %v401, %v486
        %v552 = vmul.f32 %v406, %v491
        %v553 = vmul.f32 %v409, %v496
        %v554 = vmul.f32 %v414, %v501
        %v555 = vmul.f32 %v417, %v506
        %v556 = vmul.f32 %v422, %v511
        %v557 = vmul.f32 %v425, %v516
        %v558 = vmul.f32 %v430, %v521
        %v559 = vmul.f32 %v433, %v526
        %v560 = vmul.f32 %v438, %v531
        %v561 = vmul.f32 %v441, %v536
        %v562 = vmul.f32 %v446, %v541
        %v563 = vmul.f32 %v449, %v546
        %v564 = vpack.c.bf16 %v549, %v548
        %v565 = vpack.c.bf16 %v551, %v550
        %v566 = vpack.c.bf16 %v553, %v552
        %v567 = vpack.c.bf16 %v555, %v554
        %v568 = vpack.c.bf16 %v557, %v556
        %v569 = vpack.c.bf16 %v559, %v558
        %v570 = vpack.c.bf16 %v561, %v560
        %v571 = vpack.c.bf16 %v563, %v562
        %572 = vst [vmem:[#allocation2] sm:$0xff] %v564
        %573 = vst [vmem:[#allocation2 + $0x10] sm:$0xff] %v565
        %574 = vst [vmem:[#allocation2 + $0x20] sm:$0xff] %v566
        %575 = vst [vmem:[#allocation2 + $0x30] sm:$0xff] %v567
        %576 = vst [vmem:[#allocation2 + $0x40] sm:$0xff] %v568
        %577 = vst [vmem:[#allocation2 + $0x50] sm:$0xff] %v569
        %578 = vst [vmem:[#allocation2 + $0x60] sm:$0xff] %v570
        %579 = vst [vmem:[#allocation2 + $0x70] sm:$0xff] %v571
        %s580 = smul.u32 %s18, 32
        %s581 = smul.addr %s580, 4
        %s582 = scalar_lea.vmem [#allocation3], %s581
        %v583 = vld [vmem:[%s582] sm:$0xf]
        %v584 = vld [vmem:[%s582 + $0x4] sm:$0xf]
        %v585 = vld [vmem:[%s582 + $0x8] sm:$0xf]
        %v586 = vld [vmem:[%s582 + $0xc] sm:$0xf]
        %v587 = vld [vmem:[%s582 + $0x10] sm:$0xf]
        %v588 = vld [vmem:[%s582 + $0x14] sm:$0xf]
        %v589 = vld [vmem:[%s582 + $0x18] sm:$0xf]
        %v590 = vld [vmem:[%s582 + $0x1c] sm:$0xf]
        %v591 = vld [vmem:[%s582 + $0x20] sm:$0xf]
        %v592 = vld [vmem:[%s582 + $0x24] sm:$0xf]
        %v593 = vld [vmem:[%s582 + $0x28] sm:$0xf]
        %v594 = vld [vmem:[%s582 + $0x2c] sm:$0xf]
        %v595 = vld [vmem:[%s582 + $0x30] sm:$0xf]
        %v596 = vld [vmem:[%s582 + $0x34] sm:$0xf]
        %v597 = vld [vmem:[%s582 + $0x38] sm:$0xf]
        %v598 = vld [vmem:[%s582 + $0x3c] sm:$0xf]
        %v599 = vld [vmem:[%s582 + $0x40] sm:$0xf]
        %v600 = vld [vmem:[%s582 + $0x44] sm:$0xf]
        %v601 = vld [vmem:[%s582 + $0x48] sm:$0xf]
        %v602 = vld [vmem:[%s582 + $0x4c] sm:$0xf]
        %v603 = vld [vmem:[%s582 + $0x50] sm:$0xf]
        %v604 = vld [vmem:[%s582 + $0x54] sm:$0xf]
        %v605 = vld [vmem:[%s582 + $0x58] sm:$0xf]
        %v606 = vld [vmem:[%s582 + $0x5c] sm:$0xf]
        %v607 = vld [vmem:[%s582 + $0x60] sm:$0xf]
        %v608 = vld [vmem:[%s582 + $0x64] sm:$0xf]
        %v609 = vld [vmem:[%s582 + $0x68] sm:$0xf]
        %v610 = vld [vmem:[%s582 + $0x6c] sm:$0xf]
        %v611 = vld [vmem:[%s582 + $0x70] sm:$0xf]
        %v612 = vld [vmem:[%s582 + $0x74] sm:$0xf]
        %v613 = vld [vmem:[%s582 + $0x78] sm:$0xf]
        %v614 = vld [vmem:[%s582 + $0x7c] sm:$0xf]
        %s615 = scalar_lea.vmem %s4, %s18
        %v616 = vld [vmem:[%s615] sm:$0x1]
        %v617 = vld [vmem:[#allocation2] sm:$0xff]
        %v618 = vld [vmem:[#allocation2 + $0x8] sm:$0xff]
        %v619 = vld [vmem:[#allocation2 + $0x10] sm:$0xff]
        %v620 = vld [vmem:[#allocation2 + $0x18] sm:$0xff]
        %v621 = vld [vmem:[#allocation2 + $0x20] sm:$0xff]
        %v622 = vld [vmem:[#allocation2 + $0x28] sm:$0xff]
        %v623 = vld [vmem:[#allocation2 + $0x30] sm:$0xff]
        %v624 = vld [vmem:[#allocation2 + $0x38] sm:$0xff]
        %v625 = vld [vmem:[#allocation2 + $0x40] sm:$0xff]
        %v626 = vld [vmem:[#allocation2 + $0x48] sm:$0xff]
        %v627 = vld [vmem:[#allocation2 + $0x50] sm:$0xff]
        %v628 = vld [vmem:[#allocation2 + $0x58] sm:$0xff]
        %v629 = vld [vmem:[#allocation2 + $0x60] sm:$0xff]
        %v630 = vld [vmem:[#allocation2 + $0x68] sm:$0xff]
        %v631 = vld [vmem:[#allocation2 + $0x70] sm:$0xff]
        %v632 = vld [vmem:[#allocation2 + $0x78] sm:$0xff]
        %v634 = vlaneseq
        %v635 = vshrl.u32 %v634, 7
        %v636 = vsub.s32 0, %v635
        %v637 = vrot.slane %v616, %v636
        %v671 = vunpack.c.l.b16 %v583
        %v672 = vunpack.c.l.b16 %v584
        %v673 = vunpack.c.l.b16 %v585
        %v674 = vunpack.c.l.b16 %v586
        %v675 = vunpack.c.l.b16 %v587
        %v676 = vunpack.c.l.b16 %v588
        %v677 = vunpack.c.l.b16 %v589
        %v678 = vunpack.c.l.b16 %v590
        %v679 = vunpack.c.l.b16 %v591
        %v680 = vunpack.c.l.b16 %v592
        %v681 = vunpack.c.l.b16 %v593
        %v682 = vunpack.c.l.b16 %v594
        %v683 = vunpack.c.l.b16 %v595
        %v684 = vunpack.c.l.b16 %v596
        %v685 = vunpack.c.l.b16 %v597
        %v686 = vunpack.c.l.b16 %v598
        %v687 = vunpack.c.l.b16 %v599
        %v688 = vunpack.c.l.b16 %v600
        %v689 = vunpack.c.l.b16 %v601
        %v690 = vunpack.c.l.b16 %v602
        %v691 = vunpack.c.l.b16 %v603
        %v692 = vunpack.c.l.b16 %v604
        %v693 = vunpack.c.l.b16 %v605
        %v694 = vunpack.c.l.b16 %v606
        %v695 = vunpack.c.l.b16 %v607
        %v696 = vunpack.c.l.b16 %v608
        %v697 = vunpack.c.l.b16 %v609
        %v698 = vunpack.c.l.b16 %v610
        %v699 = vunpack.c.l.b16 %v611
        %v700 = vunpack.c.l.b16 %v612
        %v701 = vunpack.c.l.b16 %v613
        %v702 = vunpack.c.l.b16 %v614
        %v703 = vpack.c.b16 %v672, %v671
        %v704 = vpack.c.b16 %v674, %v673
        %v705 = vpack.c.b16 %v676, %v675
        %v706 = vpack.c.b16 %v678, %v677
        %v707 = vpack.c.b16 %v680, %v679
        %v708 = vpack.c.b16 %v682, %v681
        %v709 = vpack.c.b16 %v684, %v683
        %v710 = vpack.c.b16 %v686, %v685
        %v711 = vpack.c.b16 %v688, %v687
        %v712 = vpack.c.b16 %v690, %v689
        %v713 = vpack.c.b16 %v692, %v691
        %v714 = vpack.c.b16 %v694, %v693
        %v715 = vpack.c.b16 %v696, %v695
        %v716 = vpack.c.b16 %v698, %v697
        %v717 = vpack.c.b16 %v700, %v699
        %v718 = vpack.c.b16 %v702, %v701
        %735 = vmatprep.subr.bf16.mxu0 0
        %736 = vmatpush1.bf16.msra.mxu0 %v703
        %737 = vmatprep.subr.bf16.mxu0 0
        %738 = vmatpush1.bf16.msra.mxu0 %v704
        %739 = vmatprep.subr.bf16.mxu0 0
        %740 = vmatpush1.bf16.msra.mxu0 %v705
        %741 = vmatprep.subr.bf16.mxu0 0
        %742 = vmatpush1.bf16.msra.mxu0 %v706
        %743 = vmatprep.subr.bf16.mxu0 0
        %744 = vmatpush1.bf16.msra.mxu0 %v707
        %745 = vmatprep.subr.bf16.mxu0 0
        %746 = vmatpush1.bf16.msra.mxu0 %v708
        %747 = vmatprep.subr.bf16.mxu0 0
        %748 = vmatpush1.bf16.msra.mxu0 %v709
        %749 = vmatprep.subr.bf16.mxu0 0
        %750 = vmatpush1.bf16.msra.mxu0 %v710
        %751 = vmatprep.subr.bf16.mxu0 0
        %752 = vmatpush1.bf16.msra.mxu0 %v711
        %753 = vmatprep.subr.bf16.mxu0 0
        %754 = vmatpush1.bf16.msra.mxu0 %v712
        %755 = vmatprep.subr.bf16.mxu0 0
        %756 = vmatpush1.bf16.msra.mxu0 %v713
        %757 = vmatprep.subr.bf16.mxu0 0
        %758 = vmatpush1.bf16.msra.mxu0 %v714
        %759 = vmatprep.subr.bf16.mxu0 0
        %760 = vmatpush1.bf16.msra.mxu0 %v715
        %761 = vmatprep.subr.bf16.mxu0 0
        %762 = vmatpush1.bf16.msra.mxu0 %v716
        %763 = vmatprep.subr.bf16.mxu0 0
        %764 = vmatpush1.bf16.msra.mxu0 %v717
        %765 = vmatprep.subr.bf16.mxu0 0
        %766 = vmatpush1.bf16.msra.mxu0 %v718
        %767 = vmatprep.mubr.bf16.mxu0 %v618
        %768 = vmatmul.mubr.bf16.gmra.mrb[0].mxu0 %v617
        %v769 = vpop.f32.mrb[0].mxu0
        %v770 = vadd.f32 %v637, %v769
        %v771 = vpop.f32.mrb[0].mxu0
        %v772 = vpop.f32.mrb[0].mxu0
        %v773 = vadd.f32 %v637, %v772
        %v774 = vpop.f32.mrb[0].mxu0
        %775 = vmatprep.mubr.bf16.mxu0 %v620
        %776 = vmatmul.mubr.bf16.gmra.mrb[0].mxu0 %v619
        %v777 = vpop.f32.mrb[0].mxu0
        %v778 = vadd.f32 %v637, %v777
        %v779 = vpop.f32.mrb[0].mxu0
        %v780 = vpop.f32.mrb[0].mxu0
        %v781 = vadd.f32 %v637, %v780
        %v782 = vpop.f32.mrb[0].mxu0
        %783 = vmatprep.mubr.bf16.mxu0 %v622
        %784 = vmatmul.mubr.bf16.gmra.mrb[0].mxu0 %v621
        %v785 = vpop.f32.mrb[0].mxu0
        %v786 = vadd.f32 %v637, %v785
        %v787 = vpop.f32.mrb[0].mxu0
        %v788 = vpop.f32.mrb[0].mxu0
        %v789 = vadd.f32 %v637, %v788
        %v790 = vpop.f32.mrb[0].mxu0
        %791 = vmatprep.mubr.bf16.mxu0 %v624
        %792 = vmatmul.mubr.bf16.gmra.mrb[0].mxu0 %v623
        %v793 = vpop.f32.mrb[0].mxu0
        %v794 = vadd.f32 %v637, %v793
        %v795 = vpop.f32.mrb[0].mxu0
        %v796 = vpop.f32.mrb[0].mxu0
        %v797 = vadd.f32 %v637, %v796
        %v798 = vpop.f32.mrb[0].mxu0
        %799 = vmatprep.mubr.bf16.mxu0 %v626
        %800 = vmatmul.mubr.bf16.gmra.mrb[0].mxu0 %v625
        %v801 = vpop.f32.mrb[0].mxu0
        %v802 = vadd.f32 %v637, %v801
        %v803 = vpop.f32.mrb[0].mxu0
        %v804 = vpop.f32.mrb[0].mxu0
        %v805 = vadd.f32 %v637, %v804
        %v806 = vpop.f32.mrb[0].mxu0
        %807 = vmatprep.mubr.bf16.mxu0 %v628
        %808 = vmatmul.mubr.bf16.gmra.mrb[0].mxu0 %v627
        %v809 = vpop.f32.mrb[0].mxu0
        %v810 = vadd.f32 %v637, %v809
        %v811 = vpop.f32.mrb[0].mxu0
        %v812 = vpop.f32.mrb[0].mxu0
        %v813 = vadd.f32 %v637, %v812
        %v814 = vpop.f32.mrb[0].mxu0
        %815 = vmatprep.mubr.bf16.mxu0 %v630
        %816 = vmatmul.mubr.bf16.gmra.mrb[0].mxu0 %v629
        %v817 = vpop.f32.mrb[0].mxu0
        %v818 = vadd.f32 %v637, %v817
        %v819 = vpop.f32.mrb[0].mxu0
        %v820 = vpop.f32.mrb[0].mxu0
        %v821 = vadd.f32 %v637, %v820
        %v822 = vpop.f32.mrb[0].mxu0
        %823 = vmatprep.mubr.bf16.mxu0 %v632
        %824 = vmatmul.mubr.bf16.gmra.mrb[0].mxu0 %v631
        %v825 = vpop.f32.mrb[0].mxu0
        %v826 = vadd.f32 %v637, %v825
        %v827 = vpop.f32.mrb[0].mxu0
        %v828 = vpop.f32.mrb[0].mxu0
        %v829 = vadd.f32 %v637, %v828
        %v830 = vpop.f32.mrb[0].mxu0
        %831 = vdwg.mxu0
        %p832 = scmp.lt.s32.totalorder %s18, 2
        // Predicated region
        $region49: #{tpu_custom_call.1} parent=39 // pred_check
          %p833 = pneg %p832
        $region50: #{tpu_custom_call.1} parent=39 // pred_check_branch
          %835 = sbr.rel (%p833) target = $region52
        $region51: #{tpu_custom_call.1} parent=39 // pred_region
          %v836 = vmax.f32 %v770, 0.0
          %v837 = vmax.f32 %v773, 0.0
          %v838 = vmax.f32 %v778, 0.0
          %v839 = vmax.f32 %v781, 0.0
          %v840 = vmax.f32 %v786, 0.0
          %v841 = vmax.f32 %v789, 0.0
          %v842 = vmax.f32 %v794, 0.0
          %v843 = vmax.f32 %v797, 0.0
          %v844 = vmax.f32 %v802, 0.0
          %v845 = vmax.f32 %v805, 0.0
          %v846 = vmax.f32 %v810, 0.0
          %v847 = vmax.f32 %v813, 0.0
          %v848 = vmax.f32 %v818, 0.0
          %v849 = vmax.f32 %v821, 0.0
          %v850 = vmax.f32 %v826, 0.0
          %v851 = vmax.f32 %v829, 0.0
          %v852 = vpack.c.bf16 %v837, %v836
          %v853 = vpack.c.bf16 %v839, %v838
          %v854 = vpack.c.bf16 %v841, %v840
          %v855 = vpack.c.bf16 %v843, %v842
          %v856 = vpack.c.bf16 %v845, %v844
          %v857 = vpack.c.bf16 %v847, %v846
          %v858 = vpack.c.bf16 %v849, %v848
          %v859 = vpack.c.bf16 %v851, %v850
          %860 = vst [vmem:[#allocation2 + $0x8] sm:$0xff] %v852
          %861 = vst [vmem:[#allocation2 + $0x18] sm:$0xff] %v853
          %862 = vst [vmem:[#allocation2 + $0x28] sm:$0xff] %v854
          %863 = vst [vmem:[#allocation2 + $0x38] sm:$0xff] %v855
          %864 = vst [vmem:[#allocation2 + $0x48] sm:$0xff] %v856
          %865 = vst [vmem:[#allocation2 + $0x58] sm:$0xff] %v857
          %866 = vst [vmem:[#allocation2 + $0x68] sm:$0xff] %v858
          %867 = vst [vmem:[#allocation2 + $0x78] sm:$0xff] %v859
        $region52: #{tpu_custom_call.1} parent=39 // pred_fallthru
          _
        %p868 = scmp.eq.s32.totalorder %s18, 2
        // Predicated region
        $region53: #{tpu_custom_call.1} parent=39 // pred_check
          %p869 = pneg %p868
        $region54: #{tpu_custom_call.1} parent=39 // pred_check_branch
          %871 = sbr.rel (%p869) target = $region56
        $region55: #{tpu_custom_call.1} parent=39 // pred_region
          %872 = vst [vmem:[#allocation6] sm:$0xff] %v770
          %873 = vst [vmem:[#allocation6 + $0x8] sm:$0xff] %v773
          %874 = vst [vmem:[#allocation6 + $0x10] sm:$0xff] %v778
          %875 = vst [vmem:[#allocation6 + $0x18] sm:$0xff] %v781
          %876 = vst [vmem:[#allocation6 + $0x20] sm:$0xff] %v786
          %877 = vst [vmem:[#allocation6 + $0x28] sm:$0xff] %v789
          %878 = vst [vmem:[#allocation6 + $0x30] sm:$0xff] %v794
          %879 = vst [vmem:[#allocation6 + $0x38] sm:$0xff] %v797
          %880 = vst [vmem:[#allocation6 + $0x40] sm:$0xff] %v802
          %881 = vst [vmem:[#allocation6 + $0x48] sm:$0xff] %v805
          %882 = vst [vmem:[#allocation6 + $0x50] sm:$0xff] %v810
          %883 = vst [vmem:[#allocation6 + $0x58] sm:$0xff] %v813
          %884 = vst [vmem:[#allocation6 + $0x60] sm:$0xff] %v818
          %885 = vst [vmem:[#allocation6 + $0x68] sm:$0xff] %v821
          %886 = vst [vmem:[#allocation6 + $0x70] sm:$0xff] %v826
          %887 = vst [vmem:[#allocation6 + $0x78] sm:$0xff] %v829
        $region56: #{tpu_custom_call.1} parent=39 // pred_fallthru
          _
        // Predicated region
        $region57: #{tpu_custom_call.1} parent=39 // pred_check
          %p888 = pneg %p136
        $region58: #{tpu_custom_call.1} parent=39 // pred_check_branch
          %890 = sbr.rel (%p888) target = $region60
        $region59: #{tpu_custom_call.1} parent=39 // pred_region
          %s892 = ssub.s32 2048, 2048
          %893 = vsyncadd [#allocation5], %s892
          %s894 = sshll.u32 [#allocation6], 4
          %s895 = int_to_ptr.vmem [resolvable:$true] %s894
          %900 = dma.vmem_to_hbm [thread:$0]  %s895, 2048, %s5, [#allocation5], 128, 128, 8
        $region60: #{tpu_custom_call.1} parent=39 // pred_fallthru
          _
        // Predicated region
        $region61: #{tpu_custom_call.1} parent=39 // pred_check
          %p901 = pneg %p136
        $region62: #{tpu_custom_call.1} parent=39 // pred_check_branch
          %903 = sbr.rel (%p901) target = $region64
        $region63: #{tpu_custom_call.1} parent=39 // pred_region
          %904 = dma.done [#allocation5], 2048
        $region64: #{tpu_custom_call.1} parent=39 // pred_fallthru
          _
      $region40: #{tpu_custom_call.1} parent=5 // pred_fallthru
        _
      %p905 = scmp.le.s32.totalorder 2, %s13
      // Predicated region
      $region65: #{tpu_custom_call.1} parent=5 // pred_check
        %p906 = pneg %p905
      $region66: #{tpu_custom_call.1} parent=5 // pred_check_branch
        %908 = sbr.rel (%p906) target = $region68
      $region67: #{tpu_custom_call.1} parent=5 // pred_region
        %s909 = ssub.s32 %s13, 2
      $region68: #{tpu_custom_call.1} parent=5 // pred_fallthru
        _
    $region6: #{tpu_custom_call.1} parent=1 // loop_footer
      %s17 = sadd.s32 1, %s13
    $region7: #{tpu_custom_call.1} parent=1 // loop_footer_branch
      %12 = sbr.rel target = $region3
    $region8: #{tpu_custom_call.1} parent=1 // loop_exit
      _
    %910 = vsyncpa [#allocation4], 1
    %s911 = scalar_lea.sflag [#allocation4], 1
    %912 = vsyncpa %s911, 1
    %913 = vsyncpa [#allocation5], 1
    %s914 = scalar_lea.sflag [#allocation5], 1
    %915 = vsyncpa %s914, 1

</llo_original>
